<compile_context>
chip_gen: v6e
topology: v6e:2x2x1
jax: 0.10.0
libtpu: 0.0.40
codegen_flags: <defaults>
</compile_context>

<pallas_src>
import functools

import jax
import jax.numpy as jnp
from jax import lax
from jax.experimental import pallas as pl
from jax.experimental.pallas import tpu as pltpu


def _bce_loss_kernel(obj_w_ref, noobj_w_ref, x_ref, t_ref, out_ref, acc_ref,
                     *, n_valid, block_n, block_b):
    k = pl.program_id(1)

    @pl.when(k == 0)
    def _init():
        acc_ref[...] = jnp.zeros_like(acc_ref)

    # Cast AFTER the DMA so HBM traffic stays in the caller's dtype.
    x = x_ref[...].astype(jnp.float32)      # (BB, TN)
    t = t_ref[...].astype(jnp.float32)      # (BB, TN)

    is_pos = t == 1.0
    w = jnp.where(is_pos, obj_w_ref[0], noobj_w_ref[0])   # fold weights per elem
    arg = jnp.where(is_pos, x, 1.0 - x)

    # Mask out-of-range lanes of the last N tile (padding content is undefined).
    if n_valid % block_n != 0:
        col = k * block_n + lax.broadcasted_iota(jnp.int32, (block_b, block_n), 1)
        valid = col < n_valid
        w = jnp.where(valid, w, 0.0)
        arg = jnp.where(valid, arg, 1.0)    # log(1 + 1e-14) == 0 exactly in f32

    # Single transcendental per element; lane-parallel VPU accumulate.
    acc_ref[...] += -w * jnp.log(arg + 1e-14)

    @pl.when(k == pl.num_programs(1) - 1)
    def _finalize():
        # One cross-lane (XLU) reduce per batch block; lane-dense 128-wide store.
        row_sum = jnp.sum(acc_ref[...], axis=1, keepdims=True)      # (BB, 1)
        out_ref[...] = jnp.broadcast_to(row_sum, out_ref.shape)      # (BB, 128)


def bce_loss(inputs, targets, obj_w, noobj_w, *, block_n=512, block_b=8):
    """Pallas equivalent of BCELoss(reduction='mean').forward(inputs, targets, obj_w, noobj_w)."""
    assert inputs.shape == targets.shape and inputs.ndim == 2
    B, N = inputs.shape

    # Tile width: multiple of 128 lanes, capped at (rounded-up) N. Small enough
    # that 2 inputs x 2 pipeline buffers fit every generation's scoped VMEM.
    n_ceil = pl.cdiv(N, 128) * 128
    block_n = min(max(128, (block_n // 128) * 128), n_ceil)
    gb = pl.cdiv(B, block_b)
    gn = pl.cdiv(N, block_n)

    obj_w_arr = jnp.reshape(jnp.asarray(obj_w, dtype=jnp.float32), (1,))
    noobj_w_arr = jnp.reshape(jnp.asarray(noobj_w, dtype=jnp.float32), (1,))

    kernel = functools.partial(
        _bce_loss_kernel, n_valid=N, block_n=block_n, block_b=block_b
    )

    out_rows = gb * block_b
    cost = pl.CostEstimate(
        flops=6 * B * N,
        transcendentals=B * N,
        bytes_accessed=(inputs.size * inputs.dtype.itemsize
                        + targets.size * targets.dtype.itemsize
                        + out_rows * 128 * 4),
    )

    row_sums = pl.pallas_call(
        kernel,
        out_shape=jax.ShapeDtypeStruct((out_rows, 128), jnp.float32),
        grid_spec=pltpu.PrefetchScalarGridSpec(
            num_scalar_prefetch=0,
            grid=(gb, gn),
            in_specs=[
                pl.BlockSpec(memory_space=pltpu.SMEM),                 # obj_w
                pl.BlockSpec(memory_space=pltpu.SMEM),                 # noobj_w
                pl.BlockSpec((block_b, block_n), lambda i, k: (i, k)),  # inputs
                pl.BlockSpec((block_b, block_n), lambda i, k: (i, k)),  # targets
            ],
            out_specs=pl.BlockSpec((block_b, 128), lambda i, k: (i, 0)),
            scratch_shapes=[pltpu.VMEM((block_b, block_n), jnp.float32)],
        ),
        compiler_params=pltpu.CompilerParams(
            dimension_semantics=("parallel", "arbitrary"),
            vmem_limit_bytes=32 * 1024 * 1024,
        ),
        cost_estimate=cost,
    )(obj_w_arr, noobj_w_arr, inputs, targets)

    # mean over batch of per-row sums (obj_w/noobj_w already folded per element).
    return jnp.sum(row_sums[:B, 0]) / B


def _bce_loss_ref(inputs, targets, obj_w, noobj_w):
    # Pure-JAX reference mirroring the PyTorch module.
    inputs = inputs.astype(jnp.float32)
    targets = targets.astype(jnp.float32)
    pos_id = (targets == 1.0).astype(jnp.float32)
    neg_id = 1.0 - pos_id
    pos_loss = -pos_id * jnp.log(inputs + 1e-14)
    neg_loss = -neg_id * jnp.log(1.0 - inputs + 1e-14)
    pos_loss = jnp.mean(jnp.sum(pos_loss, axis=1))
    neg_loss = jnp.mean(jnp.sum(neg_loss, axis=1))
    return obj_w * pos_loss + noobj_w * neg_loss


if __name__ == "__main__":
    key = jax.random.PRNGKey(0)
    k1, k2, k3, k4 = jax.random.split(key, 4)

    # Case 1: N a multiple of the tile width (4 pipelined k-steps).
    B, N = 8, 1024
    inputs = jax.random.uniform(k1, (B, N), dtype=jnp.float32,
                                minval=0.01, maxval=0.99)
    targets = (jax.random.uniform(k2, (B, N)) > 0.7).astype(jnp.float32)
    obj_w, noobj_w = 5.0, 1.0

    out = jax.block_until_ready(bce_loss(inputs, targets, obj_w, noobj_w,
                                         block_n=256))
    ref = _bce_loss_ref(inputs, targets, obj_w, noobj_w)
    assert jnp.allclose(out, ref, rtol=1e-4, atol=1e-4), (out, ref)

    # Case 2: ragged N (exercises the in-kernel remainder-tile masking).
    B2, N2 = 8, 1000
    inputs2 = jax.random.uniform(k3, (B2, N2), dtype=jnp.float32,
                                 minval=0.01, maxval=0.99)
    targets2 = (jax.random.uniform(k4, (B2, N2)) > 0.6).astype(jnp.float32)

    out2 = jax.block_until_ready(bce_loss(inputs2, targets2, 2.0, 0.5,
                                          block_n=256))
    ref2 = _bce_loss_ref(inputs2, targets2, 2.0, 0.5)
    assert jnp.allclose(out2, ref2, rtol=1e-4, atol=1e-4), (out2, ref2)

    print("KERNEL_OK")
</pallas_src>

<mosaic_0001>
module attributes {stable_mosaic.version = 11 : i64} {
  func.func @_bce_loss_kernel(%arg0: i32, %arg1: i32, %arg2: memref<1xf32, #tpu.memory_space<smem>>, %arg3: memref<1xf32, #tpu.memory_space<smem>>, %arg4: memref<8x256xf32, #tpu.memory_space<vmem>>, %arg5: memref<8x256xf32, #tpu.memory_space<vmem>>, %arg6: memref<8x128xf32, #tpu.memory_space<vmem>>, %arg7: memref<8x256xf32, #tpu.memory_space<vmem>>) attributes {dimension_semantics = [#tpu.dimension_semantics<parallel>, #tpu.dimension_semantics<arbitrary>], iteration_bounds = array<i64: 1, 4>, scalar_prefetch = 0 : i64, scratch_operands = 1 : i64, tpu.core_type = #tpu.core_type<tc>, window_params = [{transform_indices = @transform_0, window_bounds = array<i64: 1>}, {transform_indices = @transform_1, window_bounds = array<i64: 1>}, {transform_indices = @transform_2, window_bounds = array<i64: 8, 256>}, {transform_indices = @transform_3, window_bounds = array<i64: 8, 256>}, {transform_indices = @transform_4, window_bounds = array<i64: 8, 128>}]} {
    %c0_i32 = arith.constant 0 : i32
    %0 = arith.cmpi eq, %arg1, %c0_i32 : i32
    %1 = arith.extui %0 : i1 to i32
    %c0_i32_0 = arith.constant 0 : i32
    %2 = arith.cmpi ne, %1, %c0_i32_0 : i32
    scf.if %2 {
      %cst_14 = arith.constant 0.000000e+00 : f32
      %27 = vector.broadcast %cst_14 : f32 to vector<8x256xf32>
      %c0_15 = arith.constant 0 : index
      %c0_16 = arith.constant 0 : index
      %28 = vector.load %arg7[%c0_15, %c0_16] : memref<8x256xf32, #tpu.memory_space<vmem>>, vector<8x256xf32>
      tpu.vector_store %arg7[%c0_15, %c0_16], %27 {strides = array<i32>} : memref<8x256xf32, #tpu.memory_space<vmem>>, vector<8x256xf32>,
    } else {
    }
    %c0 = arith.constant 0 : index
    %c0_1 = arith.constant 0 : index
    %3 = vector.load %arg4[%c0, %c0_1] : memref<8x256xf32, #tpu.memory_space<vmem>>, vector<8x256xf32>
    %c0_2 = arith.constant 0 : index
    %c0_3 = arith.constant 0 : index
    %4 = vector.load %arg5[%c0_2, %c0_3] : memref<8x256xf32, #tpu.memory_space<vmem>>, vector<8x256xf32>
    %cst = arith.constant 1.000000e+00 : f32
    %5 = vector.broadcast %cst : f32 to vector<8x256xf32>
    %6 = arith.cmpf oeq, %4, %5 : vector<8x256xf32>
    %c0_4 = arith.constant 0 : index
    %7 = memref.load %arg2[%c0_4] : memref<1xf32, #tpu.memory_space<smem>>
    %c0_5 = arith.constant 0 : index
    %8 = memref.load %arg3[%c0_5] : memref<1xf32, #tpu.memory_space<smem>>
    %9 = vector.broadcast %7 : f32 to vector<8x256xf32>
    %10 = vector.broadcast %8 : f32 to vector<8x256xf32>
    %11 = arith.select %6, %9, %10 : vector<8x256xi1>, vector<8x256xf32>
    %cst_6 = arith.constant 1.000000e+00 : f32
    %12 = vector.broadcast %cst_6 : f32 to vector<8x256xf32>
    %13 = arith.subf %12, %3 : vector<8x256xf32>
    %14 = arith.select %6, %3, %13 : vector<8x256xi1>, vector<8x256xf32>
    %c0_7 = arith.constant 0 : index
    %c0_8 = arith.constant 0 : index
    %15 = vector.load %arg7[%c0_7, %c0_8] : memref<8x256xf32, #tpu.memory_space<vmem>>, vector<8x256xf32>
    %cst_9 = arith.constant 0.000000e+00 : f32
    %16 = vector.broadcast %cst_9 : f32 to vector<8x256xf32>
    %17 = arith.subf %16, %11 : vector<8x256xf32>
    %cst_10 = arith.constant 9.99999982E-15 : f32
    %18 = vector.broadcast %cst_10 : f32 to vector<8x256xf32>
    %19 = arith.addf %14, %18 : vector<8x256xf32>
    %20 = math.log %19 : vector<8x256xf32>
    %21 = arith.mulf %17, %20 : vector<8x256xf32>
    %22 = arith.addf %15, %21 : vector<8x256xf32>
    %c0_11 = arith.constant 0 : index
    %c0_12 = arith.constant 0 : index
    %23 = vector.load %arg7[%c0_11, %c0_12] : memref<8x256xf32, #tpu.memory_space<vmem>>, vector<8x256xf32>
    tpu.vector_store %arg7[%c0_11, %c0_12], %22 {strides = array<i32>} : memref<8x256xf32, #tpu.memory_space<vmem>>, vector<8x256xf32>,
    %c3_i32 = arith.constant 3 : i32
    %24 = arith.cmpi eq, %arg1, %c3_i32 : i32
    %25 = arith.extui %24 : i1 to i32
    %c0_i32_13 = arith.constant 0 : i32
    %26 = arith.cmpi ne, %25, %c0_i32_13 : i32
    scf.if %26 {
      %c0_14 = arith.constant 0 : index
      %c0_15 = arith.constant 0 : index
      %27 = vector.load %arg7[%c0_14, %c0_15] : memref<8x256xf32, #tpu.memory_space<vmem>>, vector<8x256xf32>
      %cst_16 = arith.constant dense<0.000000e+00> : vector<8xf32>
      %28 = vector.multi_reduction <add>, %27, %cst_16 [1] : vector<8x256xf32> to vector<8xf32>
      %29 = vector.shape_cast %28 : vector<8xf32> to vector<8x1xf32>
      %30 = vector.shape_cast %29 : vector<8x1xf32> to vector<8x1xf32>
      %31 = vector.broadcast %30 : vector<8x1xf32> to vector<8x128xf32>
      %c0_17 = arith.constant 0 : index
      %c0_18 = arith.constant 0 : index
      %32 = vector.load %arg6[%c0_17, %c0_18] : memref<8x128xf32, #tpu.memory_space<vmem>>, vector<8x128xf32>
      tpu.vector_store %arg6[%c0_17, %c0_18], %31 {strides = array<i32>} : memref<8x128xf32, #tpu.memory_space<vmem>>, vector<8x128xf32>,
    } else {
    }
    return
  }
  func.func @transform_0(%arg0: i32, %arg1: i32) -> i32 {
    %c0_i32 = arith.constant 0 : i32
    %c0_i32_0 = arith.constant 0 : i32
    return %c0_i32 : i32
  }
  func.func @transform_1(%arg0: i32, %arg1: i32) -> i32 {
    %c0_i32 = arith.constant 0 : i32
    %c0_i32_0 = arith.constant 0 : i32
    return %c0_i32 : i32
  }
  func.func @transform_2(%arg0: i32, %arg1: i32) -> (i32, i32) {
    %c0_i32 = arith.constant 0 : i32
    return %arg0, %arg1 : i32, i32
  }
  func.func @transform_3(%arg0: i32, %arg1: i32) -> (i32, i32) {
    %c0_i32 = arith.constant 0 : i32
    return %arg0, %arg1 : i32, i32
  }
  func.func @transform_4(%arg0: i32, %arg1: i32) -> (i32, i32) {
    %c0_i32 = arith.constant 0 : i32
    %c0_i32_0 = arith.constant 0 : i32
    return %arg0, %c0_i32 : i32, i32
  }
}

</mosaic_0001>

<llo_original>
// kernel: tpu_custom_call.1
$region0: #{tpu_custom_call.1}
  #allocation0 [shape = 'u32[]', space=smem, size = 0x4, offset = 0x4, fixed_abs, tag = 'smem constant byte address 0x4 - core index']
  #allocation1 [shape = 'u32[144,128]{1,0:T(1,128)}', space=vmem, size = 0x12000, scoped, tag = 'internal scratch']
  #allocation2 [shape = 'f32[8,256]{1,0:T(8,128)}', space=vmem, size = 0x2000, scoped, tag = 'scratch operand']
  #allocation3 [shape = 'f32[1]{0:T(128)S(6)}', space=smem, size = 0x200, scoped, tag = 'scoped memory for tpu_custom_call.1']
  #allocation4 [shape = 'f32[1]{0:T(128)S(6)}', space=smem, size = 0x200, scoped, tag = 'scoped memory for tpu_custom_call.1']
  %s0 = inlined_call_operand.<no memory space> [shape: f32[1], index: 0, kind: input, shape index: {}]
  %s1 = inlined_call_operand.<no memory space> [shape: f32[1], index: 1, kind: input, shape index: {}]
  %s2 = inlined_call_operand.hbm [shape: f32[8,1024], index: 2, kind: input, shape index: {}]
  %s3 = inlined_call_operand.hbm [shape: f32[8,1024], index: 3, kind: input, shape index: {}]
  %s4 = inlined_call_operand.hbm [shape: f32[8,128], index: 4, kind: output, shape index: {}]
  %s5 = sld [smem:[#allocation0]]
  $region65: #{tpu_custom_call.1} parent=0
    _
  %s7 = ssub.s32 1, %s5
  %s8 = scalar_select 0, %s7, %s5
  %9 = sst [smem:[#allocation3]] %s0
  %10 = sst [smem:[#allocation4]] %s1
  $region1: #{tpu_custom_call.1} parent=0
    #allocation5 [shape = 'u8[16384]{0}', space=vmem, size = 0x4000, scoped, tag = 'input window, operand 2']
    #allocation6 [shape = 's32[2]{0}', space=sflag, size = 0x8, scoped, tag = 'scoped memory for tpu_custom_call.1']
    #allocation7 [shape = 's32[2]{0}', space=sflag, size = 0x8, scoped, tag = 'scoped memory for tpu_custom_call.1']
    #allocation8 [shape = 'u8[16384]{0}', space=vmem, size = 0x4000, scoped, tag = 'input window, operand 3']
    #allocation9 [shape = 's32[2]{0}', space=sflag, size = 0x8, scoped, tag = 'scoped memory for tpu_custom_call.1']
    #allocation10 [shape = 'u8[4096]{0}', space=vmem, size = 0x1000, scoped, tag = 'output window, operand 0, single buffered']
    %11 = vsyncpa [#allocation6], 0
    %s12 = scalar_lea.sflag [#allocation6], 1
    %13 = vsyncpa %s12, 0
    %14 = vsyncpa [#allocation9], 0
    %s15 = scalar_lea.sflag [#allocation9], 1
    %16 = vsyncpa %s15, 0
    %17 = vsyncpa [#allocation7], 0
    loop: start=0, step=1, limit=6
    $region2: #{tpu_custom_call.1} parent=1 // loop_pre_header
      _
    $region3: #{tpu_custom_call.1} parent=1 // loop_header
      %s19 = sphi 0, %s23
      %p20 = scmp.ge.s32.totalorder %s19, 6
      %s26 = sphi 0, %s38
      %s27 = sphi 0, %s34
      %s28 = sphi 0, %s26
      %s29 = sphi 0, %s27
      %s30 = sphi 0, %s28
      %s31 = sphi 0, %s29
      %s39 = sphi 0, %s39
      %s41 = sphi 0, %s39
      %s42 = sphi 0, %s41
      %s56 = sphi 0, %s42
      %s60 = sphi 0, %s60
      %s62 = sphi 0, %s60
      %s63 = sphi 0, %s62
      %s77 = sphi 0, %s63
      %s85 = sphi 0, %s87
      %s88 = sphi 0, %s85
      %s89 = sphi 0, %s88
      %s105 = sphi 0, %s89
      %s113 = sphi 0, %s115
      %s116 = sphi 0, %s113
      %s117 = sphi 0, %s116
      %s133 = sphi 0, %s117
      %s139 = sphi 0, %s141
      %s142 = sphi 0, %s139
      %s143 = sphi 0, %s142
      %s159 = sphi 0, %s143
    $region4: #{tpu_custom_call.1} parent=1 // loop_header_branch
      %22 = sbr.rel (%p20) target = $region8
    $region5: #{tpu_custom_call.1} parent=1 // loop_body
      %s24 = ssub.s32 %s19, 1
      %s25 = ssub.s32 %s19, 2
      %s32 = sadd.s32 1, %s27
      %p33 = scmp.ge.s32.totalorder %s32, 4
      %s34 = scalar_select %p33, 0, %s32
      %s35 = sadd.s32 1, %s26
      %s36 = scalar_select %p33, %s35, %s26
      %p37 = scmp.ge.s32.totalorder %s36, 1
      %s38 = scalar_select %p37, 0, %s36
      %s40 = sadd.s32 %s39, 1
      %p43 = scmp.eq.s32.totalorder %s19, 3
      %p44 = scmp.ne.s32.totalorder %s39, %s41
      %p45 = scmp.eq.s32.totalorder %s19, 0
      %p46 = por %p44, %p45
      %p47 = scmp.ne.s32.totalorder %s39, %s41
      %p48 = scmp.eq.s32.totalorder %s24, 3
      %p49 = por %p47, %p48
      %p50 = scmp.ne.s32.totalorder %s41, %s42
      %p51 = scmp.eq.s32.totalorder %s24, 0
      %p52 = por %p50, %p51
      %p53 = scmp.ne.s32.totalorder %s41, %s42
      %p54 = scmp.eq.s32.totalorder %s25, 3
      %p55 = por %p53, %p54
      %p57 = scmp.ne.s32.totalorder %s42, %s56
      %p58 = scmp.eq.s32.totalorder %s25, 0
      %p59 = por %p57, %p58
      %s61 = sadd.s32 %s60, 1
      %p64 = scmp.eq.s32.totalorder %s19, 3
      %p65 = scmp.ne.s32.totalorder %s60, %s62
      %p66 = scmp.eq.s32.totalorder %s19, 0
      %p67 = por %p65, %p66
      %p68 = scmp.ne.s32.totalorder %s60, %s62
      %p69 = scmp.eq.s32.totalorder %s24, 3
      %p70 = por %p68, %p69
      %p71 = scmp.ne.s32.totalorder %s62, %s63
      %p72 = scmp.eq.s32.totalorder %s24, 0
      %p73 = por %p71, %p72
      %p74 = scmp.ne.s32.totalorder %s62, %s63
      %p75 = scmp.eq.s32.totalorder %s25, 3
      %p76 = por %p74, %p75
      %p78 = scmp.ne.s32.totalorder %s63, %s77
      %p79 = scmp.eq.s32.totalorder %s25, 0
      %p80 = por %p78, %p79
      %s81 = ssub.s32 %s26, %s38
      %s82 = ssub.s32 %s27, %s34
      %s83 = sor.u32 %s81, %s82
      %p84 = scmp.eq.s32.totalorder %s83, 0
      %s86 = sadd.s32 %s85, 1
      %s87 = scalar_select %p84, %s85, %s86
      %p90 = pneg %p84
      %p91 = scmp.eq.s32.totalorder %s19, 3
      %p92 = por %p90, %p91
      %p93 = scmp.ne.s32.totalorder %s85, %s88
      %p94 = scmp.eq.s32.totalorder %s19, 0
      %p95 = por %p93, %p94
      %p96 = scmp.ne.s32.totalorder %s85, %s88
      %p97 = scmp.eq.s32.totalorder %s24, 3
      %p98 = por %p96, %p97
      %p99 = scmp.ne.s32.totalorder %s88, %s89
      %p100 = scmp.eq.s32.totalorder %s24, 0
      %p101 = por %p99, %p100
      %p102 = scmp.ne.s32.totalorder %s88, %s89
      %p103 = scmp.eq.s32.totalorder %s25, 3
      %p104 = por %p102, %p103
      %p106 = scmp.ne.s32.totalorder %s89, %s105
      %p107 = scmp.eq.s32.totalorder %s25, 0
      %p108 = por %p106, %p107
      %s109 = ssub.s32 %s26, %s38
      %s110 = ssub.s32 %s27, %s34
      %s111 = sor.u32 %s109, %s110
      %p112 = scmp.eq.s32.totalorder %s111, 0
      %s114 = sadd.s32 %s113, 1
      %s115 = scalar_select %p112, %s113, %s114
      %p118 = pneg %p112
      %p119 = scmp.eq.s32.totalorder %s19, 3
      %p120 = por %p118, %p119
      %p121 = scmp.ne.s32.totalorder %s113, %s116
      %p122 = scmp.eq.s32.totalorder %s19, 0
      %p123 = por %p121, %p122
      %p124 = scmp.ne.s32.totalorder %s113, %s116
      %p125 = scmp.eq.s32.totalorder %s24, 3
      %p126 = por %p124, %p125
      %p127 = scmp.ne.s32.totalorder %s116, %s117
      %p128 = scmp.eq.s32.totalorder %s24, 0
      %p129 = por %p127, %p128
      %p130 = scmp.ne.s32.totalorder %s116, %s117
      %p131 = scmp.eq.s32.totalorder %s25, 3
      %p132 = por %p130, %p131
      %p134 = scmp.ne.s32.totalorder %s117, %s133
      %p135 = scmp.eq.s32.totalorder %s25, 0
      %p136 = por %p134, %p135
      %s137 = ssub.s32 %s26, %s38
      %p138 = scmp.eq.s32.totalorder %s137, 0
      %s140 = sadd.s32 %s139, 1
      %s141 = scalar_select %p138, %s139, %s140
      %p144 = pneg %p138
      %p145 = scmp.eq.s32.totalorder %s19, 3
      %p146 = por %p144, %p145
      %p147 = scmp.ne.s32.totalorder %s139, %s142
      %p148 = scmp.eq.s32.totalorder %s19, 0
      %p149 = por %p147, %p148
      %p150 = scmp.ne.s32.totalorder %s139, %s142
      %p151 = scmp.eq.s32.totalorder %s24, 3
      %p152 = por %p150, %p151
      %p153 = scmp.ne.s32.totalorder %s142, %s143
      %p154 = scmp.eq.s32.totalorder %s24, 0
      %p155 = por %p153, %p154
      %p156 = scmp.ne.s32.totalorder %s142, %s143
      %p157 = scmp.eq.s32.totalorder %s25, 3
      %p158 = por %p156, %p157
      %p160 = scmp.ne.s32.totalorder %s143, %s159
      %p161 = scmp.eq.s32.totalorder %s25, 0
      %p162 = por %p160, %p161
      %p163 = scmp.le.s32.totalorder 1, %s19
      %p164 = scmp.lt.s32.totalorder %s19, 5
      %p165 = pnand %p163, %p164
      %p166 = pneg %p165
      // Predicated region
      $region9: #{tpu_custom_call.1} parent=5 // pred_check
        _
      $region10: #{tpu_custom_call.1} parent=5 // pred_check_branch
        %168 = sbr.rel (%p165) target = $region12
      $region11: #{tpu_custom_call.1} parent=5 // pred_region
        %s169 = ssub.s32 %s19, 1
        // Predicated region
        $region13: #{tpu_custom_call.1} parent=11 // pred_check
          %p170 = pneg %p52
        $region14: #{tpu_custom_call.1} parent=11 // pred_check_branch
          %172 = sbr.rel (%p170) target = $region16
        $region15: #{tpu_custom_call.1} parent=11 // pred_region
          _
        $region16: #{tpu_custom_call.1} parent=11 // pred_fallthru
          _
        // Predicated region
        $region17: #{tpu_custom_call.1} parent=11 // pred_check
          %p173 = pneg %p73
        $region18: #{tpu_custom_call.1} parent=11 // pred_check_branch
          %175 = sbr.rel (%p173) target = $region20
        $region19: #{tpu_custom_call.1} parent=11 // pred_region
          _
        $region20: #{tpu_custom_call.1} parent=11 // pred_fallthru
          _
      $region12: #{tpu_custom_call.1} parent=5 // pred_fallthru
        _
      %p176 = scmp.lt.s32.totalorder %s19, 4
      // Predicated region
      $region21: #{tpu_custom_call.1} parent=5 // pred_check
        %p177 = pneg %p176
      $region22: #{tpu_custom_call.1} parent=5 // pred_check_branch
        %179 = sbr.rel (%p177) target = $region24
      $region23: #{tpu_custom_call.1} parent=5 // pred_region
        // Predicated region
        $region25: #{tpu_custom_call.1} parent=23 // pred_check
          %p180 = pneg %p95
        $region26: #{tpu_custom_call.1} parent=23 // pred_check_branch
          %182 = sbr.rel (%p180) target = $region28
        $region27: #{tpu_custom_call.1} parent=23 // pred_region
          %s183 = sand.u32 %s85, 1
          %s184 = scalar_lea.sflag [#allocation6], %s183
          %s185 = sand.u32 %s85, 1
          %s186 = smul.addr %s185, 16
          %s187 = scalar_lea.vmem [#allocation5], %s186
          %s188 = smul.u32 2, %s27
          %s190 = ssub.s32 256, 256
          %191 = vsyncadd %s184, %s190
          %s192 = smul.addr %s26, 8
          %s193 = sadd.s32 %s188, %s192
          %s194 = smul.addr %s193, 128
          %s195 = scalar_lea.hbm %s2, %s194
          %s197 = sshll.u32 %s187, 4
          %s198 = int_to_ptr.vmem [resolvable:$true] %s197
          %200 = dma.hbm_to_vmem [thread:$0]  %s195, 256, %s198, %s184
        $region28: #{tpu_custom_call.1} parent=23 // pred_fallthru
          _
        // Predicated region
        $region29: #{tpu_custom_call.1} parent=23 // pred_check
          %p201 = pneg %p123
        $region30: #{tpu_custom_call.1} parent=23 // pred_check_branch
          %203 = sbr.rel (%p201) target = $region32
        $region31: #{tpu_custom_call.1} parent=23 // pred_region
          %s204 = sand.u32 %s113, 1
          %s205 = scalar_lea.sflag [#allocation9], %s204
          %s206 = sand.u32 %s113, 1
          %s207 = smul.addr %s206, 16
          %s208 = scalar_lea.vmem [#allocation8], %s207
          %s209 = smul.u32 2, %s27
          %s211 = ssub.s32 256, 256
          %212 = vsyncadd %s205, %s211
          %s213 = smul.addr %s26, 8
          %s214 = sadd.s32 %s209, %s213
          %s215 = smul.addr %s214, 128
          %s216 = scalar_lea.hbm %s3, %s215
          %s218 = sshll.u32 %s208, 4
          %s219 = int_to_ptr.vmem [resolvable:$true] %s218
          %221 = dma.hbm_to_vmem [thread:$0]  %s216, 256, %s219, %s205
        $region32: #{tpu_custom_call.1} parent=23 // pred_fallthru
          _
      $region24: #{tpu_custom_call.1} parent=5 // pred_fallthru
        _
      %p222 = scmp.le.s32.totalorder 1, %s19
      %p223 = scmp.lt.s32.totalorder %s19, 5
      %p224 = pnand %p222, %p223
      %p225 = pneg %p224
      // Predicated region
      $region33: #{tpu_custom_call.1} parent=5 // pred_check
        _
      $region34: #{tpu_custom_call.1} parent=5 // pred_check_branch
        %227 = sbr.rel (%p224) target = $region36
      $region35: #{tpu_custom_call.1} parent=5 // pred_region
        %s228 = ssub.s32 %s19, 1
        %s229 = sand.u32 %s88, 1
        %s230 = scalar_lea.sflag [#allocation6], %s229
        %s231 = sand.u32 %s88, 1
        %s232 = smul.addr %s231, 16
        %s233 = scalar_lea.vmem [#allocation5], %s232
        // Predicated region
        $region37: #{tpu_custom_call.1} parent=35 // pred_check
          %p234 = pneg %p101
        $region38: #{tpu_custom_call.1} parent=35 // pred_check_branch
          %236 = sbr.rel (%p234) target = $region40
        $region39: #{tpu_custom_call.1} parent=35 // pred_region
          %237 = dma.done %s230, 256
        $region40: #{tpu_custom_call.1} parent=35 // pred_fallthru
          _
        %s238 = sand.u32 %s116, 1
        %s239 = scalar_lea.sflag [#allocation9], %s238
        %s240 = sand.u32 %s116, 1
        %s241 = smul.addr %s240, 16
        %s242 = scalar_lea.vmem [#allocation8], %s241
        // Predicated region
        $region41: #{tpu_custom_call.1} parent=35 // pred_check
          %p243 = pneg %p129
        $region42: #{tpu_custom_call.1} parent=35 // pred_check_branch
          %245 = sbr.rel (%p243) target = $region44
        $region43: #{tpu_custom_call.1} parent=35 // pred_region
          %246 = dma.done %s239, 256
        $region44: #{tpu_custom_call.1} parent=35 // pred_fallthru
          _
        %p247 = pneg %p52
        %p248 = pneg %p49
        %p249 = pneg %p73
        %p250 = pneg %p70
        %s251 = sand.u32 %s88, 1
        %s252 = scalar_lea.sflag [#allocation6], %s251
        %s253 = sand.u32 %s88, 1
        %s254 = smul.addr %s253, 16
        %s255 = scalar_lea.vmem [#allocation5], %s254
        %p256 = pneg %p101
        %p257 = pneg %p98
        %s258 = sand.u32 %s116, 1
        %s259 = scalar_lea.sflag [#allocation9], %s258
        %s260 = sand.u32 %s116, 1
        %s261 = smul.addr %s260, 16
        %s262 = scalar_lea.vmem [#allocation8], %s261
        %p263 = pneg %p129
        %p264 = pneg %p126
        %p265 = pneg %p155
        %p266 = pneg %p152
        %s267 = smul.u32 2, %s29
        %s268 = smul.u32 2, %s29
        %p269 = scmp.eq.s32.totalorder %s29, 0
        // Predicated region
        $region45: #{tpu_custom_call.1} parent=35 // pred_check
          %p270 = pneg %p269
        $region46: #{tpu_custom_call.1} parent=35 // pred_check_branch
          %272 = sbr.rel (%p270) target = $region48
        $region47: #{tpu_custom_call.1} parent=35 // pred_region
          %273 = vst [vmem:[#allocation2] sm:$0xff] 0.0
          %274 = vst [vmem:[#allocation2 + $0x8] sm:$0xff] 0.0
        $region48: #{tpu_custom_call.1} parent=35 // pred_fallthru
          _
        %v275 = vld [vmem:[%s233] sm:$0xff]
        %v276 = vld [vmem:[%s233 + $0x8] sm:$0xff]
        %v277 = vld [vmem:[%s242] sm:$0xff]
        %v278 = vld [vmem:[%s242 + $0x8] sm:$0xff]
        %vm279 = vcmp.eq.f32.partialorder %v277, 1.0
        %vm280 = vcmp.eq.f32.partialorder %v278, 1.0
        %s281 = sld [smem:[#allocation3]]
        %s282 = sld [smem:[#allocation4]]
        %v283 = vstv %s281
        %v284 = vstv %s282
        %v285 = vsel %vm279, %v283, %v284
        %v286 = vsel %vm280, %v283, %v284
        %v287 = vsub.f32 1.0, %v275
        %v288 = vsub.f32 1.0, %v276
        %v289 = vsel %vm279, %v275, %v287
        %v290 = vsel %vm280, %v276, %v288
        %v291 = vld [vmem:[#allocation2] sm:$0xff]
        %v292 = vld [vmem:[#allocation2 + $0x8] sm:$0xff]
        %v293 = vsub.f32 0.0, %v285
        %v294 = vsub.f32 0.0, %v286
        %v295 = vadd.f32 %v289, 1e-14
        %v296 = vadd.f32 %v290, 1e-14
        %v297 = vlog2.pop %v295
        %v298 = vmul.f32 %v297, 0.6931472
        %v299 = vlog2.pop %v296
        %v300 = vmul.f32 %v299, 0.6931472
        %v301 = vmul.f32 %v293, %v298
        %v302 = vmul.f32 %v294, %v300
        %v303 = vadd.f32 %v291, %v301
        %v304 = vadd.f32 %v292, %v302
        %305 = vst [vmem:[#allocation2] sm:$0xff] %v303
        %306 = vst [vmem:[#allocation2 + $0x8] sm:$0xff] %v304
        %p307 = scmp.eq.s32.totalorder %s29, 3
        // Predicated region
        $region49: #{tpu_custom_call.1} parent=35 // pred_check
          %p308 = pneg %p307
        $region50: #{tpu_custom_call.1} parent=35 // pred_check_branch
          %310 = sbr.rel (%p308) target = $region52
        $region51: #{tpu_custom_call.1} parent=35 // pred_region
          %v311 = vld [vmem:[#allocation2] sm:$0xff]
          %v312 = vld [vmem:[#allocation2 + $0x8] sm:$0xff]
          %v313 = vadd.f32 %v311, %v312
          %314 = vadd.xlane.f32.xlu0 %v313
          %v315 = vpop.xlane.xlu0 %314
          %316 = vst [vmem:[#allocation10] sm:$0xff] %v315
        $region52: #{tpu_custom_call.1} parent=35 // pred_fallthru
          _
        // Predicated region
        $region53: #{tpu_custom_call.1} parent=35 // pred_check
          %p317 = pneg %p152
        $region54: #{tpu_custom_call.1} parent=35 // pred_check_branch
          %319 = sbr.rel (%p317) target = $region56
        $region55: #{tpu_custom_call.1} parent=35 // pred_region
          %s321 = ssub.s32 128, 128
          %322 = vsyncadd [#allocation7], %s321
          %s323 = smul.addr %s28, 128
          %s324 = scalar_lea.hbm %s4, %s323
          %s326 = sshll.u32 [#allocation10], 4
          %s327 = int_to_ptr.vmem [resolvable:$true] %s326
          %329 = dma.vmem_to_hbm [thread:$0]  %s327, 128, %s324, [#allocation7]
        $region56: #{tpu_custom_call.1} parent=35 // pred_fallthru
          _
        // Predicated region
        $region57: #{tpu_custom_call.1} parent=35 // pred_check
          %p330 = pneg %p152
        $region58: #{tpu_custom_call.1} parent=35 // pred_check_branch
          %332 = sbr.rel (%p330) target = $region60
        $region59: #{tpu_custom_call.1} parent=35 // pred_region
          %333 = dma.done [#allocation7], 128
        $region60: #{tpu_custom_call.1} parent=35 // pred_fallthru
          _
      $region36: #{tpu_custom_call.1} parent=5 // pred_fallthru
        _
      %p334 = scmp.le.s32.totalorder 2, %s19
      // Predicated region
      $region61: #{tpu_custom_call.1} parent=5 // pred_check
        %p335 = pneg %p334
      $region62: #{tpu_custom_call.1} parent=5 // pred_check_branch
        %337 = sbr.rel (%p335) target = $region64
      $region63: #{tpu_custom_call.1} parent=5 // pred_region
        %s338 = ssub.s32 %s19, 2
      $region64: #{tpu_custom_call.1} parent=5 // pred_fallthru
        _
    $region6: #{tpu_custom_call.1} parent=1 // loop_footer
      %s23 = sadd.s32 1, %s19
    $region7: #{tpu_custom_call.1} parent=1 // loop_footer_branch
      %18 = sbr.rel target = $region3
    $region8: #{tpu_custom_call.1} parent=1 // loop_exit
      _
    %339 = vsyncpa [#allocation6], 1
    %s340 = scalar_lea.sflag [#allocation6], 1
    %341 = vsyncpa %s340, 1
    %342 = vsyncpa [#allocation9], 1
    %s343 = scalar_lea.sflag [#allocation9], 1
    %344 = vsyncpa %s343, 1
    %345 = vsyncpa [#allocation7], 1
    %s346 = scalar_lea.sflag [#allocation7], 1
    %347 = vsyncpa %s346, 1

</llo_original>
